<compile_context>
chip_gen: v5e
topology: v5e:2x2
jax: 0.10.0
libtpu: 0.0.40
codegen_flags: <defaults>
</compile_context>

<pallas_src>
import functools

import jax
import jax.numpy as jnp
from jax.experimental import pallas as pl
from jax.experimental.pallas import tpu as pltpu

VMEM_SPEC = pl.BlockSpec(memory_space=pltpu.MemorySpace.VMEM)

EPS = 1e-5
SLOPE = 0.01


# ----------------------------------------------------------------------------
# Fused Pallas kernel: entire VAE forward on (B, C*L) slabs in VMEM
# ----------------------------------------------------------------------------
def _vae_fused_kernel(
    x_ref, spk_ref,
    e1_w, e1_b, e1_m, e1_g, e1_bt,
    e2_w, e2_b, e2_m, e2_g, e2_bt,
    wml_ref, bml_ref, wlat_ref, blat_ref, spk_tab_ref,
    g1_w, g1_b, g1_m, g1_g, g1_bt,
    g2_w, g2_b, g2_m, g2_g, g2_bt,
    xhat_ref, mean_ref, logvar_ref,
    *, eps, slope, latent_dim,
):
    def conv_block(h, w, b, m, g, bt):
        # conv (pre-unrolled to a matmul) + bias
        y = jnp.dot(h, w[...], preferred_element_type=jnp.float32) + b[...]
        # LayerNorm over channels: m is a constant block matrix that computes the
        # per-position channel mean and broadcasts it back (reduce+bcast in 1 matmul).
        mu = jnp.dot(y, m[...], preferred_element_type=jnp.float32)
        msq = jnp.dot(y * y, m[...], preferred_element_type=jnp.float32)
        var = msq - mu * mu                      # single-pass variance
        yn = (y - mu) * jax.lax.rsqrt(var + eps) * g[...] + bt[...]
        # LeakyReLU
        return jnp.where(yn >= 0.0, yn, slope * yn)

    # ---- encoder ----
    h = x_ref[...]                               # (B, C_in*L)
    h = conv_block(h, e1_w, e1_b, e1_m, e1_g, e1_bt)
    h = conv_block(h, e2_w, e2_b, e2_m, e2_g, e2_bt)   # (B, C2*L2) == flattened z_e

    # ---- mean / logvar (fused into one matmul) ----
    ml = jnp.dot(h, wml_ref[...], preferred_element_type=jnp.float32) + bml_ref[...]
    mean = ml[:, :latent_dim]
    logvar = ml[:, latent_dim:]
    mean_ref[...] = mean
    logvar_ref[...] = logvar

    # eval mode: z = mean
    z = jnp.dot(mean, wlat_ref[...], preferred_element_type=jnp.float32) + blat_ref[...]

    # ---- speaker embedding + speaker_dense, folded into one table lookup ----
    b_sz = spk_ref.shape[0]
    n_spk = spk_tab_ref.shape[0]
    iota = jax.lax.broadcasted_iota(jnp.int32, (b_sz, n_spk), 1)
    onehot = (spk_ref[...] == iota).astype(jnp.float32)          # (B, num_speakers)
    y_spk = jnp.dot(onehot, spk_tab_ref[...], preferred_element_type=jnp.float32)

    h = z + y_spk                                 # (B, C2*L2), same layout as z_e

    # ---- generator ----
    h = conv_block(h, g1_w, g1_b, g1_m, g1_g, g1_bt)
    h = conv_block(h, g2_w, g2_b, g2_m, g2_g, g2_bt)
    xhat_ref[...] = h                             # (B, C_out*L_out)


# ----------------------------------------------------------------------------
# Parameter-build-time layout transforms (done ONCE, outside the hot path)
# ----------------------------------------------------------------------------
def conv1d_as_matrix(weight, L_in, stride, padding, dilation):
    """weight (C_out, C_in, k) -> dense (C_in*L_in, C_out*L_out) matrix."""
    C_out, C_in, k = weight.shape
    L_out = (L_in + 2 * padding - dilation * (k - 1) - 1) // stride + 1
    l = jnp.arange(L_out)
    t = jnp.arange(k)
    i = jnp.arange(L_in)
    src = stride * l[None, :] + dilation * t[:, None] - padding          # (k, L_out)
    sel = (i[None, :, None] == src[:, None, :]).astype(jnp.float32)      # (k, L_in, L_out)
    m = jnp.einsum("oct,til->ciol", weight, sel)                         # (C_in, L_in, C_out, L_out)
    return m.reshape(C_in * L_in, C_out * L_out), L_out


def convtranspose1d_as_matrix(weight, L_in, stride, padding, dilation, out_padding):
    """weight (C_in, C_out, k) -> dense (C_in*L_in, C_out*L_out) matrix."""
    C_in, C_out, k = weight.shape
    L_out = (L_in - 1) * stride - 2 * padding + dilation * (k - 1) + 1 + out_padding
    i = jnp.arange(L_in)
    t = jnp.arange(k)
    l = jnp.arange(L_out)
    dst = stride * i[:, None] + dilation * t[None, :] - padding          # (L_in, k)
    sel = (l[None, None, :] == dst[:, :, None]).astype(jnp.float32)      # (L_in, k, L_out)
    m = jnp.einsum("cot,itl->ciol", weight, sel)                         # (C_in, L_in, C_out, L_out)
    return m.reshape(C_in * L_in, C_out * L_out), L_out


def pack_block(weight_mat, bias, gamma, beta, L_out):
    C_out = bias.shape[0]
    mavg = jnp.kron(jnp.ones((C_out, C_out), jnp.float32) / C_out,
                    jnp.eye(L_out, dtype=jnp.float32))
    return dict(
        w=weight_mat,
        b=jnp.repeat(bias, L_out).reshape(1, -1),
        m=mavg,
        g=jnp.repeat(gamma, L_out).reshape(1, -1),
        bt=jnp.repeat(beta, L_out).reshape(1, -1),
    )


# ----------------------------------------------------------------------------
# Parameter construction (deterministic, PyTorch-style uniform fan-in init)
# ----------------------------------------------------------------------------
def _uniform(key, shape, bound):
    return jax.random.uniform(key, shape, jnp.float32, -bound, bound)


def init_linear(key, in_f, out_f):
    k1, k2 = jax.random.split(key)
    bound = 1.0 / float(in_f) ** 0.5
    return _uniform(k1, (in_f, out_f), bound), _uniform(k2, (out_f,), bound)


def init_conv(key, c_out, c_in, k):
    k1, k2 = jax.random.split(key)
    bound = 1.0 / float(c_in * k) ** 0.5
    return _uniform(k1, (c_out, c_in, k), bound), _uniform(k2, (c_out,), bound)


def init_convT(key, c_in, c_out, k):
    k1, k2 = jax.random.split(key)
    bound = 1.0 / float(c_in * k) ** 0.5
    return _uniform(k1, (c_in, c_out, k), bound), _uniform(k2, (c_out,), bound)


def build_vae_params(key):
    # input_shape = (B=2, C_in=4, L=16)
    B, C_in, L = 2, 4, 16
    latent_dim, num_speakers, speaker_dim = 8, 4, 6

    enc = dict(ks=[3, 3], strides=[1, 2], ch=[8, 16], pads=[1, 1], dils=[1, 1])
    gen = dict(ks=[3, 3], strides=[2, 1], ch=[8, C_in], pads=[1, 1], dils=[1, 1],
               opads=[1, 0])

    keys = iter(jax.random.split(key, 16))
    params = dict(input_shape=(B, C_in, L), latent_dim=latent_dim)
    raw = {}  # PyTorch-layout weights, kept only for the pure-JAX reference check

    # encoder
    c, l = C_in, L
    for idx in range(2):
        co, k_, s, p, d = (enc["ch"][idx], enc["ks"][idx], enc["strides"][idx],
                           enc["pads"][idx], enc["dils"][idx])
        w, bias = init_conv(next(keys), co, c, k_)
        gamma = jnp.ones((co,), jnp.float32)
        beta = jnp.zeros((co,), jnp.float32)
        wm, l_out = conv1d_as_matrix(w, l, s, p, d)
        params[f"enc{idx + 1}"] = pack_block(wm, bias, gamma, beta, l_out)
        raw[f"enc{idx + 1}"] = dict(w=w, b=bias, g=gamma, bt=beta, s=s, p=p, d=d)
        c, l = co, l_out

    z_e_c, z_e_l = c, l                      # (16, 8)
    flatd = z_e_c * z_e_l                    # 128
    params["z_e_shape"] = (B, z_e_c, z_e_l)

    # fused mean/logvar dense
    wmean, bmean = init_linear(next(keys), flatd, latent_dim)
    wlog, blog = init_linear(next(keys), flatd, latent_dim)
    params["wml"] = jnp.concatenate([wmean, wlog], axis=1)          # (128, 16)
    params["bml"] = jnp.concatenate([bmean, blog]).reshape(1, -1)

    wlat, blat = init_linear(next(keys), latent_dim, flatd)
    params["wlat"] = wlat
    params["blat"] = blat.reshape(1, -1)

    spk_dict = jax.random.normal(next(keys), (num_speakers, speaker_dim), jnp.float32)
    wspk, bspk = init_linear(next(keys), speaker_dim, flatd)
    params["spk_tab"] = spk_dict @ wspk + bspk[None, :]             # (num_speakers, 128)

    raw.update(wmean=wmean, bmean=bmean, wlog=wlog, blog=blog,
               wlat=wlat, blat=blat, spk_dict=spk_dict, wspk=wspk, bspk=bspk)

    # generator
    c, l = z_e_c, z_e_l
    for idx in range(2):
        co, k_, s, p, d, op = (gen["ch"][idx], gen["ks"][idx], gen["strides"][idx],
                               gen["pads"][idx], gen["dils"][idx], gen["opads"][idx])
        w, bias = init_convT(next(keys), c, co, k_)
        gamma = jnp.ones((co,), jnp.float32)
        beta = jnp.zeros((co,), jnp.float32)
        wm, l_out = convtranspose1d_as_matrix(w, l, s, p, d, op)
        params[f"gen{idx + 1}"] = pack_block(wm, bias, gamma, beta, l_out)
        raw[f"gen{idx + 1}"] = dict(w=w, b=bias, g=gamma, bt=beta, s=s, p=p, d=d, op=op)
        c, l = co, l_out

    params["out_cl"] = (c, l)                # (4, 16)
    return params, raw


# ----------------------------------------------------------------------------
# Forward pass: ONE pallas_call for the whole model
# ----------------------------------------------------------------------------
def vae_forward(params, x, speaker):
    B, C, L = x.shape
    latent_dim = params["latent_dim"]

    flat = x.reshape(B, C * L).astype(jnp.float32)       # free metadata reshape
    spk = speaker.reshape(B, 1).astype(jnp.int32)

    args = [flat, spk]
    for name in ("enc1", "enc2"):
        lyr = params[name]
        args += [lyr["w"], lyr["b"], lyr["m"], lyr["g"], lyr["bt"]]
    args += [params["wml"], params["bml"], params["wlat"], params["blat"],
             params["spk_tab"]]
    for name in ("gen1", "gen2"):
        lyr = params[name]
        args += [lyr["w"], lyr["b"], lyr["m"], lyr["g"], lyr["bt"]]

    out_flat = params["gen2"]["b"].shape[1]

    kern = functools.partial(_vae_fused_kernel, eps=EPS, slope=SLOPE,
                             latent_dim=latent_dim)

    # Gridless single-block kernel: everything (<~0.5 MiB) lives in VMEM.
    # TODO(synk): if batch/sequence are scaled up, add a grid over B*L tiles with
    # dimension_semantics=("parallel",) to use both v7x TensorCores.
    xhat_flat, mean, logvar = pl.pallas_call(
        kern,
        out_shape=(
            jax.ShapeDtypeStruct((B, out_flat), jnp.float32),
            jax.ShapeDtypeStruct((B, latent_dim), jnp.float32),
            jax.ShapeDtypeStruct((B, latent_dim), jnp.float32),
        ),
        in_specs=[VMEM_SPEC] * len(args),
        out_specs=(VMEM_SPEC, VMEM_SPEC, VMEM_SPEC),
    )(*args)

    C_out, L_out = params["out_cl"]
    return xhat_flat.reshape(B, C_out, L_out), mean, logvar


# ----------------------------------------------------------------------------
# Pure-JAX reference (built from the raw PyTorch-layout weights) for validation
# ----------------------------------------------------------------------------
def _ref_ln_lrelu(y, gamma, beta):
    mu = jnp.mean(y, axis=1, keepdims=True)
    var = jnp.mean((y - mu) ** 2, axis=1, keepdims=True)
    yn = (y - mu) * jax.lax.rsqrt(var + EPS)
    yn = yn * gamma[None, :, None] + beta[None, :, None]
    return jnp.where(yn >= 0, yn, SLOPE * yn)


def ref_forward(raw, params, x, speaker):
    h = x
    for name in ("enc1", "enc2"):
        r = raw[name]
        y = jax.lax.conv_general_dilated(
            h, r["w"], window_strides=(r["s"],), padding=[(r["p"], r["p"])],
            rhs_dilation=(r["d"],), dimension_numbers=("NCH", "OIH", "NCH"))
        h = _ref_ln_lrelu(y + r["b"][None, :, None], r["g"], r["bt"])
    B = h.shape[0]
    z_e = h.reshape(B, -1)
    mean = z_e @ raw["wmean"] + raw["bmean"]
    logvar = z_e @ raw["wlog"] + raw["blog"]
    z = mean                                             # eval mode
    z = z @ raw["wlat"] + raw["blat"]
    y = raw["spk_dict"][speaker] @ raw["wspk"] + raw["bspk"]
    h = (z + y).reshape(params["z_e_shape"])
    for name in ("gen1", "gen2"):
        r = raw[name]
        k_ = r["w"].shape[-1]
        w_conv = jnp.flip(r["w"], -1).transpose(1, 0, 2)
        pad_l = r["d"] * (k_ - 1) - r["p"]
        pad_r = r["d"] * (k_ - 1) - r["p"] + r["op"]
        y = jax.lax.conv_general_dilated(
            h, w_conv, window_strides=(1,), padding=[(pad_l, pad_r)],
            lhs_dilation=(r["s"],), rhs_dilation=(r["d"],),
            dimension_numbers=("NCH", "OIH", "NCH"))
        h = _ref_ln_lrelu(y + r["b"][None, :, None], r["g"], r["bt"])
    return h, mean, logvar


if __name__ == "__main__":
    key = jax.random.PRNGKey(0)
    kp, kx, ks = jax.random.split(key, 3)

    params, raw = build_vae_params(kp)
    B, C, L = params["input_shape"]
    x = jax.random.normal(kx, (B, C, L), jnp.float32)
    speaker = jax.random.randint(ks, (B,), 0, params["spk_tab"].shape[0])

    fwd = jax.jit(functools.partial(vae_forward, params))
    x_hat, mean, logvar = fwd(x, speaker)
    jax.block_until_ready((x_hat, mean, logvar))

    assert x_hat.shape == (B, C, L), x_hat.shape
    assert mean.shape == (B, 8) and logvar.shape == (B, 8)

    # correctness check against a plain-JAX reference (loose tol: MXU f32 path)
    xr, mr, lr = ref_forward(raw, params, x, speaker)
    assert jnp.allclose(x_hat, xr, atol=0.1, rtol=0.1)
    assert jnp.allclose(mean, mr, atol=0.1, rtol=0.1)
    assert jnp.allclose(logvar, lr, atol=0.1, rtol=0.1)

    print("KERNEL_OK")
</pallas_src>

<mosaic_0001>
module attributes {stable_mosaic.version = 11 : i64} {
  func.func @_vae_fused_kernel(%arg0: memref<2x64xf32, #tpu.memory_space<vmem>>, %arg1: memref<2x1xi32, #tpu.memory_space<vmem>>, %arg2: memref<64x128xf32, #tpu.memory_space<vmem>>, %arg3: memref<1x128xf32, #tpu.memory_space<vmem>>, %arg4: memref<128x128xf32, #tpu.memory_space<vmem>>, %arg5: memref<1x128xf32, #tpu.memory_space<vmem>>, %arg6: memref<1x128xf32, #tpu.memory_space<vmem>>, %arg7: memref<128x128xf32, #tpu.memory_space<vmem>>, %arg8: memref<1x128xf32, #tpu.memory_space<vmem>>, %arg9: memref<128x128xf32, #tpu.memory_space<vmem>>, %arg10: memref<1x128xf32, #tpu.memory_space<vmem>>, %arg11: memref<1x128xf32, #tpu.memory_space<vmem>>, %arg12: memref<128x16xf32, #tpu.memory_space<vmem>>, %arg13: memref<1x16xf32, #tpu.memory_space<vmem>>, %arg14: memref<8x128xf32, #tpu.memory_space<vmem>>, %arg15: memref<1x128xf32, #tpu.memory_space<vmem>>, %arg16: memref<4x128xf32, #tpu.memory_space<vmem>>, %arg17: memref<128x128xf32, #tpu.memory_space<vmem>>, %arg18: memref<1x128xf32, #tpu.memory_space<vmem>>, %arg19: memref<128x128xf32, #tpu.memory_space<vmem>>, %arg20: memref<1x128xf32, #tpu.memory_space<vmem>>, %arg21: memref<1x128xf32, #tpu.memory_space<vmem>>, %arg22: memref<128x64xf32, #tpu.memory_space<vmem>>, %arg23: memref<1x64xf32, #tpu.memory_space<vmem>>, %arg24: memref<64x64xf32, #tpu.memory_space<vmem>>, %arg25: memref<1x64xf32, #tpu.memory_space<vmem>>, %arg26: memref<1x64xf32, #tpu.memory_space<vmem>>, %arg27: memref<2x64xf32, #tpu.memory_space<vmem>>, %arg28: memref<2x8xf32, #tpu.memory_space<vmem>>, %arg29: memref<2x8xf32, #tpu.memory_space<vmem>>) attributes {dimension_semantics = [], scalar_prefetch = 0 : i64, scratch_operands = 0 : i64, tpu.core_type = #tpu.core_type<tc>} {
    %c0 = arith.constant 0 : index
    %c0_0 = arith.constant 0 : index
    %0 = vector.load %arg0[%c0, %c0_0] : memref<2x64xf32, #tpu.memory_space<vmem>>, vector<2x64xf32>
    %c0_1 = arith.constant 0 : index
    %c0_2 = arith.constant 0 : index
    %1 = vector.load %arg2[%c0_1, %c0_2] : memref<64x128xf32, #tpu.memory_space<vmem>>, vector<64x128xf32>
    %cst = arith.constant dense<0.000000e+00> : vector<2x128xf32>
    %2 = tpu.matmul %0, %1, %cst {dimension_numbers = #tpu.dot_dimension_numbers<[1], [0], [0], [1], [0, 0, 1, 1], [], []>} : vector<2x64xf32>, vector<64x128xf32>, vector<2x128xf32> -> vector<2x128xf32>
    %c0_3 = arith.constant 0 : index
    %c0_4 = arith.constant 0 : index
    %3 = vector.load %arg3[%c0_3, %c0_4] : memref<1x128xf32, #tpu.memory_space<vmem>>, vector<1x128xf32>
    %4 = vector.broadcast %3 : vector<1x128xf32> to vector<2x128xf32>
    %5 = arith.addf %2, %4 : vector<2x128xf32>
    %c0_5 = arith.constant 0 : index
    %c0_6 = arith.constant 0 : index
    %6 = vector.load %arg4[%c0_5, %c0_6] : memref<128x128xf32, #tpu.memory_space<vmem>>, vector<128x128xf32>
    %cst_7 = arith.constant dense<0.000000e+00> : vector<2x128xf32>
    %7 = tpu.matmul %5, %6, %cst_7 {dimension_numbers = #tpu.dot_dimension_numbers<[1], [0], [0], [1], [0, 0, 1, 1], [], []>} : vector<2x128xf32>, vector<128x128xf32>, vector<2x128xf32> -> vector<2x128xf32>
    %8 = arith.mulf %5, %5 : vector<2x128xf32>
    %c0_8 = arith.constant 0 : index
    %c0_9 = arith.constant 0 : index
    %9 = vector.load %arg4[%c0_8, %c0_9] : memref<128x128xf32, #tpu.memory_space<vmem>>, vector<128x128xf32>
    %cst_10 = arith.constant dense<0.000000e+00> : vector<2x128xf32>
    %10 = tpu.matmul %8, %9, %cst_10 {dimension_numbers = #tpu.dot_dimension_numbers<[1], [0], [0], [1], [0, 0, 1, 1], [], []>} : vector<2x128xf32>, vector<128x128xf32>, vector<2x128xf32> -> vector<2x128xf32>
    %11 = arith.mulf %7, %7 : vector<2x128xf32>
    %12 = arith.subf %10, %11 : vector<2x128xf32>
    %13 = arith.subf %5, %7 : vector<2x128xf32>
    %cst_11 = arith.constant 9.99999974E-6 : f32
    %14 = vector.broadcast %cst_11 : f32 to vector<2x128xf32>
    %15 = arith.addf %12, %14 : vector<2x128xf32>
    %16 = math.rsqrt %15 : vector<2x128xf32>
    %17 = arith.mulf %13, %16 : vector<2x128xf32>
    %c0_12 = arith.constant 0 : index
    %c0_13 = arith.constant 0 : index
    %18 = vector.load %arg5[%c0_12, %c0_13] : memref<1x128xf32, #tpu.memory_space<vmem>>, vector<1x128xf32>
    %19 = vector.broadcast %18 : vector<1x128xf32> to vector<2x128xf32>
    %20 = arith.mulf %17, %19 : vector<2x128xf32>
    %c0_14 = arith.constant 0 : index
    %c0_15 = arith.constant 0 : index
    %21 = vector.load %arg6[%c0_14, %c0_15] : memref<1x128xf32, #tpu.memory_space<vmem>>, vector<1x128xf32>
    %22 = vector.broadcast %21 : vector<1x128xf32> to vector<2x128xf32>
    %23 = arith.addf %20, %22 : vector<2x128xf32>
    %cst_16 = arith.constant 0.000000e+00 : f32
    %24 = vector.broadcast %cst_16 : f32 to vector<2x128xf32>
    %25 = arith.cmpf oge, %23, %24 : vector<2x128xf32>
    %cst_17 = arith.constant 0.00999999977 : f32
    %26 = vector.broadcast %cst_17 : f32 to vector<2x128xf32>
    %27 = arith.mulf %26, %23 : vector<2x128xf32>
    %28 = arith.select %25, %23, %27 : vector<2x128xi1>, vector<2x128xf32>
    %c0_18 = arith.constant 0 : index
    %c0_19 = arith.constant 0 : index
    %29 = vector.load %arg7[%c0_18, %c0_19] : memref<128x128xf32, #tpu.memory_space<vmem>>, vector<128x128xf32>
    %cst_20 = arith.constant dense<0.000000e+00> : vector<2x128xf32>
    %30 = tpu.matmul %28, %29, %cst_20 {dimension_numbers = #tpu.dot_dimension_numbers<[1], [0], [0], [1], [0, 0, 1, 1], [], []>} : vector<2x128xf32>, vector<128x128xf32>, vector<2x128xf32> -> vector<2x128xf32>
    %c0_21 = arith.constant 0 : index
    %c0_22 = arith.constant 0 : index
    %31 = vector.load %arg8[%c0_21, %c0_22] : memref<1x128xf32, #tpu.memory_space<vmem>>, vector<1x128xf32>
    %32 = vector.broadcast %31 : vector<1x128xf32> to vector<2x128xf32>
    %33 = arith.addf %30, %32 : vector<2x128xf32>
    %c0_23 = arith.constant 0 : index
    %c0_24 = arith.constant 0 : index
    %34 = vector.load %arg9[%c0_23, %c0_24] : memref<128x128xf32, #tpu.memory_space<vmem>>, vector<128x128xf32>
    %cst_25 = arith.constant dense<0.000000e+00> : vector<2x128xf32>
    %35 = tpu.matmul %33, %34, %cst_25 {dimension_numbers = #tpu.dot_dimension_numbers<[1], [0], [0], [1], [0, 0, 1, 1], [], []>} : vector<2x128xf32>, vector<128x128xf32>, vector<2x128xf32> -> vector<2x128xf32>
    %36 = arith.mulf %33, %33 : vector<2x128xf32>
    %c0_26 = arith.constant 0 : index
    %c0_27 = arith.constant 0 : index
    %37 = vector.load %arg9[%c0_26, %c0_27] : memref<128x128xf32, #tpu.memory_space<vmem>>, vector<128x128xf32>
    %cst_28 = arith.constant dense<0.000000e+00> : vector<2x128xf32>
    %38 = tpu.matmul %36, %37, %cst_28 {dimension_numbers = #tpu.dot_dimension_numbers<[1], [0], [0], [1], [0, 0, 1, 1], [], []>} : vector<2x128xf32>, vector<128x128xf32>, vector<2x128xf32> -> vector<2x128xf32>
    %39 = arith.mulf %35, %35 : vector<2x128xf32>
    %40 = arith.subf %38, %39 : vector<2x128xf32>
    %41 = arith.subf %33, %35 : vector<2x128xf32>
    %cst_29 = arith.constant 9.99999974E-6 : f32
    %42 = vector.broadcast %cst_29 : f32 to vector<2x128xf32>
    %43 = arith.addf %40, %42 : vector<2x128xf32>
    %44 = math.rsqrt %43 : vector<2x128xf32>
    %45 = arith.mulf %41, %44 : vector<2x128xf32>
    %c0_30 = arith.constant 0 : index
    %c0_31 = arith.constant 0 : index
    %46 = vector.load %arg10[%c0_30, %c0_31] : memref<1x128xf32, #tpu.memory_space<vmem>>, vector<1x128xf32>
    %47 = vector.broadcast %46 : vector<1x128xf32> to vector<2x128xf32>
    %48 = arith.mulf %45, %47 : vector<2x128xf32>
    %c0_32 = arith.constant 0 : index
    %c0_33 = arith.constant 0 : index
    %49 = vector.load %arg11[%c0_32, %c0_33] : memref<1x128xf32, #tpu.memory_space<vmem>>, vector<1x128xf32>
    %50 = vector.broadcast %49 : vector<1x128xf32> to vector<2x128xf32>
    %51 = arith.addf %48, %50 : vector<2x128xf32>
    %cst_34 = arith.constant 0.000000e+00 : f32
    %52 = vector.broadcast %cst_34 : f32 to vector<2x128xf32>
    %53 = arith.cmpf oge, %51, %52 : vector<2x128xf32>
    %cst_35 = arith.constant 0.00999999977 : f32
    %54 = vector.broadcast %cst_35 : f32 to vector<2x128xf32>
    %55 = arith.mulf %54, %51 : vector<2x128xf32>
    %56 = arith.select %53, %51, %55 : vector<2x128xi1>, vector<2x128xf32>
    %c0_36 = arith.constant 0 : index
    %c0_37 = arith.constant 0 : index
    %57 = vector.load %arg12[%c0_36, %c0_37] : memref<128x16xf32, #tpu.memory_space<vmem>>, vector<128x16xf32>
    %cst_38 = arith.constant dense<0.000000e+00> : vector<2x16xf32>
    %58 = tpu.matmul %56, %57, %cst_38 {dimension_numbers = #tpu.dot_dimension_numbers<[1], [0], [0], [1], [0, 0, 1, 1], [], []>} : vector<2x128xf32>, vector<128x16xf32>, vector<2x16xf32> -> vector<2x16xf32>
    %c0_39 = arith.constant 0 : index
    %c0_40 = arith.constant 0 : index
    %59 = vector.load %arg13[%c0_39, %c0_40] : memref<1x16xf32, #tpu.memory_space<vmem>>, vector<1x16xf32>
    %60 = vector.broadcast %59 : vector<1x16xf32> to vector<2x16xf32>
    %61 = arith.addf %58, %60 : vector<2x16xf32>
    %62 = vector.extract_strided_slice %61 {offsets = [0, 0], sizes = [2, 8], strides = [1, 1]} : vector<2x16xf32> to vector<2x8xf32>
    %63 = vector.extract_strided_slice %61 {offsets = [0, 8], sizes = [2, 8], strides = [1, 1]} : vector<2x16xf32> to vector<2x8xf32>
    %c0_41 = arith.constant 0 : index
    %c0_42 = arith.constant 0 : index
    %64 = vector.load %arg28[%c0_41, %c0_42] : memref<2x8xf32, #tpu.memory_space<vmem>>, vector<2x8xf32>
    tpu.vector_store %arg28[%c0_41, %c0_42], %62 {strides = array<i32>} : memref<2x8xf32, #tpu.memory_space<vmem>>, vector<2x8xf32>,
    %c0_43 = arith.constant 0 : index
    %c0_44 = arith.constant 0 : index
    %65 = vector.load %arg29[%c0_43, %c0_44] : memref<2x8xf32, #tpu.memory_space<vmem>>, vector<2x8xf32>
    tpu.vector_store %arg29[%c0_43, %c0_44], %63 {strides = array<i32>} : memref<2x8xf32, #tpu.memory_space<vmem>>, vector<2x8xf32>,
    %c0_45 = arith.constant 0 : index
    %c0_46 = arith.constant 0 : index
    %66 = vector.load %arg14[%c0_45, %c0_46] : memref<8x128xf32, #tpu.memory_space<vmem>>, vector<8x128xf32>
    %cst_47 = arith.constant dense<0.000000e+00> : vector<2x128xf32>
    %67 = tpu.matmul %62, %66, %cst_47 {dimension_numbers = #tpu.dot_dimension_numbers<[1], [0], [0], [1], [0, 0, 1, 1], [], []>} : vector<2x8xf32>, vector<8x128xf32>, vector<2x128xf32> -> vector<2x128xf32>
    %c0_48 = arith.constant 0 : index
    %c0_49 = arith.constant 0 : index
    %68 = vector.load %arg15[%c0_48, %c0_49] : memref<1x128xf32, #tpu.memory_space<vmem>>, vector<1x128xf32>
    %69 = vector.broadcast %68 : vector<1x128xf32> to vector<2x128xf32>
    %70 = arith.addf %67, %69 : vector<2x128xf32>
    %71 = tpu.iota {dimensions = array<i32: 1>} : vector<2x4xi32>
    %c0_50 = arith.constant 0 : index
    %c0_51 = arith.constant 0 : index
    %72 = vector.load %arg1[%c0_50, %c0_51] : memref<2x1xi32, #tpu.memory_space<vmem>>, vector<2x1xi32>
    %73 = vector.broadcast %72 : vector<2x1xi32> to vector<2x4xi32>
    %74 = arith.cmpi eq, %73, %71 : vector<2x4xi32>
    %75 = arith.extui %74 : vector<2x4xi1> to vector<2x4xi32>
    %76 = arith.sitofp %75 : vector<2x4xi32> to vector<2x4xf32>
    %c0_52 = arith.constant 0 : index
    %c0_53 = arith.constant 0 : index
    %77 = vector.load %arg16[%c0_52, %c0_53] : memref<4x128xf32, #tpu.memory_space<vmem>>, vector<4x128xf32>
    %cst_54 = arith.constant dense<0.000000e+00> : vector<2x128xf32>
    %78 = tpu.matmul %76, %77, %cst_54 {dimension_numbers = #tpu.dot_dimension_numbers<[1], [0], [0], [1], [0, 0, 1, 1], [], []>} : vector<2x4xf32>, vector<4x128xf32>, vector<2x128xf32> -> vector<2x128xf32>
    %79 = arith.addf %70, %78 : vector<2x128xf32>
    %c0_55 = arith.constant 0 : index
    %c0_56 = arith.constant 0 : index
    %80 = vector.load %arg17[%c0_55, %c0_56] : memref<128x128xf32, #tpu.memory_space<vmem>>, vector<128x128xf32>
    %cst_57 = arith.constant dense<0.000000e+00> : vector<2x128xf32>
    %81 = tpu.matmul %79, %80, %cst_57 {dimension_numbers = #tpu.dot_dimension_numbers<[1], [0], [0], [1], [0, 0, 1, 1], [], []>} : vector<2x128xf32>, vector<128x128xf32>, vector<2x128xf32> -> vector<2x128xf32>
    %c0_58 = arith.constant 0 : index
    %c0_59 = arith.constant 0 : index
    %82 = vector.load %arg18[%c0_58, %c0_59] : memref<1x128xf32, #tpu.memory_space<vmem>>, vector<1x128xf32>
    %83 = vector.broadcast %82 : vector<1x128xf32> to vector<2x128xf32>
    %84 = arith.addf %81, %83 : vector<2x128xf32>
    %c0_60 = arith.constant 0 : index
    %c0_61 = arith.constant 0 : index
    %85 = vector.load %arg19[%c0_60, %c0_61] : memref<128x128xf32, #tpu.memory_space<vmem>>, vector<128x128xf32>
    %cst_62 = arith.constant dense<0.000000e+00> : vector<2x128xf32>
    %86 = tpu.matmul %84, %85, %cst_62 {dimension_numbers = #tpu.dot_dimension_numbers<[1], [0], [0], [1], [0, 0, 1, 1], [], []>} : vector<2x128xf32>, vector<128x128xf32>, vector<2x128xf32> -> vector<2x128xf32>
    %87 = arith.mulf %84, %84 : vector<2x128xf32>
    %c0_63 = arith.constant 0 : index
    %c0_64 = arith.constant 0 : index
    %88 = vector.load %arg19[%c0_63, %c0_64] : memref<128x128xf32, #tpu.memory_space<vmem>>, vector<128x128xf32>
    %cst_65 = arith.constant dense<0.000000e+00> : vector<2x128xf32>
    %89 = tpu.matmul %87, %88, %cst_65 {dimension_numbers = #tpu.dot_dimension_numbers<[1], [0], [0], [1], [0, 0, 1, 1], [], []>} : vector<2x128xf32>, vector<128x128xf32>, vector<2x128xf32> -> vector<2x128xf32>
    %90 = arith.mulf %86, %86 : vector<2x128xf32>
    %91 = arith.subf %89, %90 : vector<2x128xf32>
    %92 = arith.subf %84, %86 : vector<2x128xf32>
    %cst_66 = arith.constant 9.99999974E-6 : f32
    %93 = vector.broadcast %cst_66 : f32 to vector<2x128xf32>
    %94 = arith.addf %91, %93 : vector<2x128xf32>
    %95 = math.rsqrt %94 : vector<2x128xf32>
    %96 = arith.mulf %92, %95 : vector<2x128xf32>
    %c0_67 = arith.constant 0 : index
    %c0_68 = arith.constant 0 : index
    %97 = vector.load %arg20[%c0_67, %c0_68] : memref<1x128xf32, #tpu.memory_space<vmem>>, vector<1x128xf32>
    %98 = vector.broadcast %97 : vector<1x128xf32> to vector<2x128xf32>
    %99 = arith.mulf %96, %98 : vector<2x128xf32>
    %c0_69 = arith.constant 0 : index
    %c0_70 = arith.constant 0 : index
    %100 = vector.load %arg21[%c0_69, %c0_70] : memref<1x128xf32, #tpu.memory_space<vmem>>, vector<1x128xf32>
    %101 = vector.broadcast %100 : vector<1x128xf32> to vector<2x128xf32>
    %102 = arith.addf %99, %101 : vector<2x128xf32>
    %cst_71 = arith.constant 0.000000e+00 : f32
    %103 = vector.broadcast %cst_71 : f32 to vector<2x128xf32>
    %104 = arith.cmpf oge, %102, %103 : vector<2x128xf32>
    %cst_72 = arith.constant 0.00999999977 : f32
    %105 = vector.broadcast %cst_72 : f32 to vector<2x128xf32>
    %106 = arith.mulf %105, %102 : vector<2x128xf32>
    %107 = arith.select %104, %102, %106 : vector<2x128xi1>, vector<2x128xf32>
    %c0_73 = arith.constant 0 : index
    %c0_74 = arith.constant 0 : index
    %108 = vector.load %arg22[%c0_73, %c0_74] : memref<128x64xf32, #tpu.memory_space<vmem>>, vector<128x64xf32>
    %cst_75 = arith.constant dense<0.000000e+00> : vector<2x64xf32>
    %109 = tpu.matmul %107, %108, %cst_75 {dimension_numbers = #tpu.dot_dimension_numbers<[1], [0], [0], [1], [0, 0, 1, 1], [], []>} : vector<2x128xf32>, vector<128x64xf32>, vector<2x64xf32> -> vector<2x64xf32>
    %c0_76 = arith.constant 0 : index
    %c0_77 = arith.constant 0 : index
    %110 = vector.load %arg23[%c0_76, %c0_77] : memref<1x64xf32, #tpu.memory_space<vmem>>, vector<1x64xf32>
    %111 = vector.broadcast %110 : vector<1x64xf32> to vector<2x64xf32>
    %112 = arith.addf %109, %111 : vector<2x64xf32>
    %c0_78 = arith.constant 0 : index
    %c0_79 = arith.constant 0 : index
    %113 = vector.load %arg24[%c0_78, %c0_79] : memref<64x64xf32, #tpu.memory_space<vmem>>, vector<64x64xf32>
    %cst_80 = arith.constant dense<0.000000e+00> : vector<2x64xf32>
    %114 = tpu.matmul %112, %113, %cst_80 {dimension_numbers = #tpu.dot_dimension_numbers<[1], [0], [0], [1], [0, 0, 1, 1], [], []>} : vector<2x64xf32>, vector<64x64xf32>, vector<2x64xf32> -> vector<2x64xf32>
    %115 = arith.mulf %112, %112 : vector<2x64xf32>
    %c0_81 = arith.constant 0 : index
    %c0_82 = arith.constant 0 : index
    %116 = vector.load %arg24[%c0_81, %c0_82] : memref<64x64xf32, #tpu.memory_space<vmem>>, vector<64x64xf32>
    %cst_83 = arith.constant dense<0.000000e+00> : vector<2x64xf32>
    %117 = tpu.matmul %115, %116, %cst_83 {dimension_numbers = #tpu.dot_dimension_numbers<[1], [0], [0], [1], [0, 0, 1, 1], [], []>} : vector<2x64xf32>, vector<64x64xf32>, vector<2x64xf32> -> vector<2x64xf32>
    %118 = arith.mulf %114, %114 : vector<2x64xf32>
    %119 = arith.subf %117, %118 : vector<2x64xf32>
    %120 = arith.subf %112, %114 : vector<2x64xf32>
    %cst_84 = arith.constant 9.99999974E-6 : f32
    %121 = vector.broadcast %cst_84 : f32 to vector<2x64xf32>
    %122 = arith.addf %119, %121 : vector<2x64xf32>
    %123 = math.rsqrt %122 : vector<2x64xf32>
    %124 = arith.mulf %120, %123 : vector<2x64xf32>
    %c0_85 = arith.constant 0 : index
    %c0_86 = arith.constant 0 : index
    %125 = vector.load %arg25[%c0_85, %c0_86] : memref<1x64xf32, #tpu.memory_space<vmem>>, vector<1x64xf32>
    %126 = vector.broadcast %125 : vector<1x64xf32> to vector<2x64xf32>
    %127 = arith.mulf %124, %126 : vector<2x64xf32>
    %c0_87 = arith.constant 0 : index
    %c0_88 = arith.constant 0 : index
    %128 = vector.load %arg26[%c0_87, %c0_88] : memref<1x64xf32, #tpu.memory_space<vmem>>, vector<1x64xf32>
    %129 = vector.broadcast %128 : vector<1x64xf32> to vector<2x64xf32>
    %130 = arith.addf %127, %129 : vector<2x64xf32>
    %cst_89 = arith.constant 0.000000e+00 : f32
    %131 = vector.broadcast %cst_89 : f32 to vector<2x64xf32>
    %132 = arith.cmpf oge, %130, %131 : vector<2x64xf32>
    %cst_90 = arith.constant 0.00999999977 : f32
    %133 = vector.broadcast %cst_90 : f32 to vector<2x64xf32>
    %134 = arith.mulf %133, %130 : vector<2x64xf32>
    %135 = arith.select %132, %130, %134 : vector<2x64xi1>, vector<2x64xf32>
    %c0_91 = arith.constant 0 : index
    %c0_92 = arith.constant 0 : index
    %136 = vector.load %arg27[%c0_91, %c0_92] : memref<2x64xf32, #tpu.memory_space<vmem>>, vector<2x64xf32>
    tpu.vector_store %arg27[%c0_91, %c0_92], %135 {strides = array<i32>} : memref<2x64xf32, #tpu.memory_space<vmem>>, vector<2x64xf32>,
    return
  }
}

</mosaic_0001>

<llo_original>
// kernel: vae_forward.1
$region0: #{vae_forward.1}
  #allocation0 [shape = 'u32[]', space=smem, size = 0x4, offset = 0x4, fixed_abs, tag = 'smem constant byte address 0x4 - core index']
  #allocation1 [shape = 'u32[72,128]{1,0:T(1,128)}', space=vmem, size = 0x9000, scoped, tag = 'internal scratch']
  %s0 = inlined_call_operand.smem [shape: u32[30], index: -1, kind: input, shape index: {}]
  %s1 = sld [smem:[%s0]]
  %s2 = scalar_lea.smem %s0, 1
  %s3 = sld [smem:[%s2]]
  %s4 = scalar_lea.smem %s0, 2
  %s5 = sld [smem:[%s4]]
  %s6 = scalar_lea.smem %s0, 3
  %s7 = sld [smem:[%s6]]
  %s8 = scalar_lea.smem %s0, 4
  %s9 = sld [smem:[%s8]]
  %s10 = scalar_lea.smem %s0, 5
  %s11 = sld [smem:[%s10]]
  %s12 = scalar_lea.smem %s0, 6
  %s13 = sld [smem:[%s12]]
  %s14 = scalar_lea.smem %s0, 7
  %s15 = sld [smem:[%s14]]
  %s16 = scalar_lea.smem %s0, 8
  %s17 = sld [smem:[%s16]]
  %s18 = scalar_lea.smem %s0, 9
  %s19 = sld [smem:[%s18]]
  %s20 = scalar_lea.smem %s0, 10
  %s21 = sld [smem:[%s20]]
  %s22 = scalar_lea.smem %s0, 11
  %s23 = sld [smem:[%s22]]
  %s24 = scalar_lea.smem %s0, 12
  %s25 = sld [smem:[%s24]]
  %s26 = scalar_lea.smem %s0, 13
  %s27 = sld [smem:[%s26]]
  %s28 = scalar_lea.smem %s0, 14
  %s29 = sld [smem:[%s28]]
  %s30 = scalar_lea.smem %s0, 15
  %s31 = sld [smem:[%s30]]
  %s32 = scalar_lea.smem %s0, 16
  %s33 = sld [smem:[%s32]]
  %s34 = scalar_lea.smem %s0, 17
  %s35 = sld [smem:[%s34]]
  %s36 = scalar_lea.smem %s0, 18
  %s37 = sld [smem:[%s36]]
  %s38 = scalar_lea.smem %s0, 19
  %s39 = sld [smem:[%s38]]
  %s40 = scalar_lea.smem %s0, 20
  %s41 = sld [smem:[%s40]]
  %s42 = scalar_lea.smem %s0, 21
  %s43 = sld [smem:[%s42]]
  %s44 = scalar_lea.smem %s0, 22
  %s45 = sld [smem:[%s44]]
  %s46 = scalar_lea.smem %s0, 23
  %s47 = sld [smem:[%s46]]
  %s48 = scalar_lea.smem %s0, 24
  %s49 = sld [smem:[%s48]]
  %s50 = scalar_lea.smem %s0, 25
  %s51 = sld [smem:[%s50]]
  %s52 = scalar_lea.smem %s0, 26
  %s53 = sld [smem:[%s52]]
  %s54 = scalar_lea.smem %s0, 27
  %s55 = sld [smem:[%s54]]
  %s56 = scalar_lea.smem %s0, 28
  %s57 = sld [smem:[%s56]]
  %s58 = scalar_lea.smem %s0, 29
  %s59 = sld [smem:[%s58]]
  %60 = xla_tuple %s55, %s57, %s59
  %s61 = sld [smem:[#allocation0]]
  $region170: #{vae_forward.1} parent=0
    _
  %s63 = ssub.s32 1, %s61
  %s64 = scalar_select 0, %s63, %s61
  $region1: #{vae_forward.1} parent=0
    #allocation2 [shape = 'u8[32768]{0}', space=vmem, size = 0x8000, scoped, tag = 'input window, operand 2, single buffered']
    #allocation3 [shape = 's32[1]{0}', space=sflag, size = 0x4, scoped, tag = 'scoped memory for vae_forward.1']
    #allocation4 [shape = 's32[1]{0}', space=sflag, size = 0x4, scoped, tag = 'scoped memory for vae_forward.1']
    #allocation5 [shape = 'u8[65536]{0}', space=vmem, size = 0x10000, scoped, tag = 'input window, operand 4, single buffered']
    #allocation6 [shape = 's32[1]{0}', space=sflag, size = 0x4, scoped, tag = 'scoped memory for vae_forward.1']
    #allocation7 [shape = 'u8[65536]{0}', space=vmem, size = 0x10000, scoped, tag = 'input window, operand 7, single buffered']
    #allocation8 [shape = 'u8[65536]{0}', space=vmem, size = 0x10000, scoped, tag = 'input window, operand 9, single buffered']
    #allocation9 [shape = 's32[1]{0}', space=sflag, size = 0x4, scoped, tag = 'scoped memory for vae_forward.1']
    #allocation10 [shape = 'u8[65536]{0}', space=vmem, size = 0x10000, scoped, tag = 'input window, operand 12, single buffered']
    #allocation11 [shape = 'u8[65536]{0}', space=vmem, size = 0x10000, scoped, tag = 'input window, operand 17, single buffered']
    #allocation12 [shape = 's32[1]{0}', space=sflag, size = 0x4, scoped, tag = 'scoped memory for vae_forward.1']
    #allocation13 [shape = 'u8[65536]{0}', space=vmem, size = 0x10000, scoped, tag = 'input window, operand 19, single buffered']
    #allocation14 [shape = 'u8[65536]{0}', space=vmem, size = 0x10000, scoped, tag = 'input window, operand 22, single buffered']
    #allocation15 [shape = 's32[1]{0}', space=sflag, size = 0x4, scoped, tag = 'scoped memory for vae_forward.1']
    #allocation16 [shape = 'u8[32768]{0}', space=vmem, size = 0x8000, scoped, tag = 'input window, operand 24, single buffered']
    #allocation17 [shape = 'u8[1024]{0}', space=vmem, size = 0x400, scoped, tag = 'output window, operand 1, single buffered']
    #allocation18 [shape = 'u8[1024]{0}', space=vmem, size = 0x400, scoped, tag = 'output window, operand 2, single buffered']
    #allocation19 [shape = 's32[1]{0}', space=sflag, size = 0x4, scoped, tag = 'scoped memory for vae_forward.1']
    %65 = vsyncpa [#allocation3], 0
    %66 = vsyncpa [#allocation6], 0
    %67 = vsyncpa [#allocation9], 0
    %68 = vsyncpa [#allocation12], 0
    %69 = vsyncpa [#allocation15], 0
    %70 = vsyncpa [#allocation4], 0
    %71 = vsyncpa [#allocation19], 0
    // Predicated region
    $region2: #{vae_forward.1} parent=1 // pred_check
      _
    $region3: #{vae_forward.1} parent=1 // pred_check_branch
      %73 = sbr.rel (0) target = $region5
    $region4: #{vae_forward.1} parent=1 // pred_region
      _
    $region5: #{vae_forward.1} parent=1 // pred_fallthru
      _
    // Predicated region
    $region6: #{vae_forward.1} parent=1 // pred_check
      _
    $region7: #{vae_forward.1} parent=1 // pred_check_branch
      %75 = sbr.rel (0) target = $region9
    $region8: #{vae_forward.1} parent=1 // pred_region
      _
    $region9: #{vae_forward.1} parent=1 // pred_fallthru
      _
    // Predicated region
    $region10: #{vae_forward.1} parent=1 // pred_check
      _
    $region11: #{vae_forward.1} parent=1 // pred_check_branch
      %77 = sbr.rel (0) target = $region13
    $region12: #{vae_forward.1} parent=1 // pred_region
      %79 = vsyncadd [#allocation3], 0
      %s80 = sshll.u32 %s5, 4
      %s81 = int_to_ptr.hbm [resolvable:$true] %s80
      %s82 = sshll.u32 [#allocation2], 4
      %s83 = int_to_ptr.vmem [resolvable:$true] %s82
      %88 = dma.hbm_to_vmem [thread:$0]  %s81, 1024, %s83, [#allocation3], 128, 128, 8
    $region13: #{vae_forward.1} parent=1 // pred_fallthru
      _
    // Predicated region
    $region14: #{vae_forward.1} parent=1 // pred_check
      _
    $region15: #{vae_forward.1} parent=1 // pred_check_branch
      %90 = sbr.rel (0) target = $region17
    $region16: #{vae_forward.1} parent=1 // pred_region
      _
    $region17: #{vae_forward.1} parent=1 // pred_fallthru
      _
    // Predicated region
    $region18: #{vae_forward.1} parent=1 // pred_check
      _
    $region19: #{vae_forward.1} parent=1 // pred_check_branch
      %92 = sbr.rel (0) target = $region21
    $region20: #{vae_forward.1} parent=1 // pred_region
      %94 = vsyncadd [#allocation6], 0
      %s95 = sshll.u32 %s9, 4
      %s96 = int_to_ptr.hbm [resolvable:$true] %s95
      %s97 = sshll.u32 [#allocation5], 4
      %s98 = int_to_ptr.vmem [resolvable:$true] %s97
      %103 = dma.hbm_to_vmem [thread:$0]  %s96, 2048, %s98, [#allocation6], 128, 128, 8
    $region21: #{vae_forward.1} parent=1 // pred_fallthru
      _
    // Predicated region
    $region22: #{vae_forward.1} parent=1 // pred_check
      _
    $region23: #{vae_forward.1} parent=1 // pred_check_branch
      %105 = sbr.rel (0) target = $region25
    $region24: #{vae_forward.1} parent=1 // pred_region
      _
    $region25: #{vae_forward.1} parent=1 // pred_fallthru
      _
    // Predicated region
    $region26: #{vae_forward.1} parent=1 // pred_check
      _
    $region27: #{vae_forward.1} parent=1 // pred_check_branch
      %107 = sbr.rel (0) target = $region29
    $region28: #{vae_forward.1} parent=1 // pred_region
      _
    $region29: #{vae_forward.1} parent=1 // pred_fallthru
      _
    // Predicated region
    $region30: #{vae_forward.1} parent=1 // pred_check
      _
    $region31: #{vae_forward.1} parent=1 // pred_check_branch
      %109 = sbr.rel (0) target = $region33
    $region32: #{vae_forward.1} parent=1 // pred_region
      %111 = vsyncadd [#allocation6], 0
      %s112 = sshll.u32 %s15, 4
      %s113 = int_to_ptr.hbm [resolvable:$true] %s112
      %s114 = sshll.u32 [#allocation7], 4
      %s115 = int_to_ptr.vmem [resolvable:$true] %s114
      %120 = dma.hbm_to_vmem [thread:$0]  %s113, 2048, %s115, [#allocation6], 128, 128, 8
    $region33: #{vae_forward.1} parent=1 // pred_fallthru
      _
    // Predicated region
    $region34: #{vae_forward.1} parent=1 // pred_check
      _
    $region35: #{vae_forward.1} parent=1 // pred_check_branch
      %122 = sbr.rel (0) target = $region37
    $region36: #{vae_forward.1} parent=1 // pred_region
      _
    $region37: #{vae_forward.1} parent=1 // pred_fallthru
      _
    // Predicated region
    $region38: #{vae_forward.1} parent=1 // pred_check
      _
    $region39: #{vae_forward.1} parent=1 // pred_check_branch
      %124 = sbr.rel (0) target = $region41
    $region40: #{vae_forward.1} parent=1 // pred_region
      %126 = vsyncadd [#allocation9], 0
      %s127 = sshll.u32 %s19, 4
      %s128 = int_to_ptr.hbm [resolvable:$true] %s127
      %s129 = sshll.u32 [#allocation8], 4
      %s130 = int_to_ptr.vmem [resolvable:$true] %s129
      %135 = dma.hbm_to_vmem [thread:$0]  %s128, 2048, %s130, [#allocation9], 128, 128, 8
    $region41: #{vae_forward.1} parent=1 // pred_fallthru
      _
    // Predicated region
    $region42: #{vae_forward.1} parent=1 // pred_check
      _
    $region43: #{vae_forward.1} parent=1 // pred_check_branch
      %137 = sbr.rel (0) target = $region45
    $region44: #{vae_forward.1} parent=1 // pred_region
      _
    $region45: #{vae_forward.1} parent=1 // pred_fallthru
      _
    // Predicated region
    $region46: #{vae_forward.1} parent=1 // pred_check
      _
    $region47: #{vae_forward.1} parent=1 // pred_check_branch
      %139 = sbr.rel (0) target = $region49
    $region48: #{vae_forward.1} parent=1 // pred_region
      _
    $region49: #{vae_forward.1} parent=1 // pred_fallthru
      _
    // Predicated region
    $region50: #{vae_forward.1} parent=1 // pred_check
      _
    $region51: #{vae_forward.1} parent=1 // pred_check_branch
      %141 = sbr.rel (0) target = $region53
    $region52: #{vae_forward.1} parent=1 // pred_region
      %143 = vsyncadd [#allocation9], 0
      %s144 = sshll.u32 %s25, 4
      %s145 = int_to_ptr.hbm [resolvable:$true] %s144
      %s146 = sshll.u32 [#allocation10], 4
      %s147 = int_to_ptr.vmem [resolvable:$true] %s146
      %152 = dma.hbm_to_vmem [thread:$0]  %s145, 2048, %s147, [#allocation9], 128, 128, 8
    $region53: #{vae_forward.1} parent=1 // pred_fallthru
      _
    // Predicated region
    $region54: #{vae_forward.1} parent=1 // pred_check
      _
    $region55: #{vae_forward.1} parent=1 // pred_check_branch
      %154 = sbr.rel (0) target = $region57
    $region56: #{vae_forward.1} parent=1 // pred_region
      _
    $region57: #{vae_forward.1} parent=1 // pred_fallthru
      _
    // Predicated region
    $region58: #{vae_forward.1} parent=1 // pred_check
      _
    $region59: #{vae_forward.1} parent=1 // pred_check_branch
      %156 = sbr.rel (0) target = $region61
    $region60: #{vae_forward.1} parent=1 // pred_region
      _
    $region61: #{vae_forward.1} parent=1 // pred_fallthru
      _
    // Predicated region
    $region62: #{vae_forward.1} parent=1 // pred_check
      _
    $region63: #{vae_forward.1} parent=1 // pred_check_branch
      %158 = sbr.rel (0) target = $region65
    $region64: #{vae_forward.1} parent=1 // pred_region
      _
    $region65: #{vae_forward.1} parent=1 // pred_fallthru
      _
    // Predicated region
    $region66: #{vae_forward.1} parent=1 // pred_check
      _
    $region67: #{vae_forward.1} parent=1 // pred_check_branch
      %160 = sbr.rel (0) target = $region69
    $region68: #{vae_forward.1} parent=1 // pred_region
      _
    $region69: #{vae_forward.1} parent=1 // pred_fallthru
      _
    // Predicated region
    $region70: #{vae_forward.1} parent=1 // pred_check
      _
    $region71: #{vae_forward.1} parent=1 // pred_check_branch
      %162 = sbr.rel (0) target = $region73
    $region72: #{vae_forward.1} parent=1 // pred_region
      %164 = vsyncadd [#allocation12], 0
      %s165 = sshll.u32 %s35, 4
      %s166 = int_to_ptr.hbm [resolvable:$true] %s165
      %s167 = sshll.u32 [#allocation11], 4
      %s168 = int_to_ptr.vmem [resolvable:$true] %s167
      %173 = dma.hbm_to_vmem [thread:$0]  %s166, 2048, %s168, [#allocation12], 128, 128, 8
    $region73: #{vae_forward.1} parent=1 // pred_fallthru
      _
    // Predicated region
    $region74: #{vae_forward.1} parent=1 // pred_check
      _
    $region75: #{vae_forward.1} parent=1 // pred_check_branch
      %175 = sbr.rel (0) target = $region77
    $region76: #{vae_forward.1} parent=1 // pred_region
      _
    $region77: #{vae_forward.1} parent=1 // pred_fallthru
      _
    // Predicated region
    $region78: #{vae_forward.1} parent=1 // pred_check
      _
    $region79: #{vae_forward.1} parent=1 // pred_check_branch
      %177 = sbr.rel (0) target = $region81
    $region80: #{vae_forward.1} parent=1 // pred_region
      %179 = vsyncadd [#allocation12], 0
      %s180 = sshll.u32 %s39, 4
      %s181 = int_to_ptr.hbm [resolvable:$true] %s180
      %s182 = sshll.u32 [#allocation13], 4
      %s183 = int_to_ptr.vmem [resolvable:$true] %s182
      %188 = dma.hbm_to_vmem [thread:$0]  %s181, 2048, %s183, [#allocation12], 128, 128, 8
    $region81: #{vae_forward.1} parent=1 // pred_fallthru
      _
    // Predicated region
    $region82: #{vae_forward.1} parent=1 // pred_check
      _
    $region83: #{vae_forward.1} parent=1 // pred_check_branch
      %190 = sbr.rel (0) target = $region85
    $region84: #{vae_forward.1} parent=1 // pred_region
      _
    $region85: #{vae_forward.1} parent=1 // pred_fallthru
      _
    // Predicated region
    $region86: #{vae_forward.1} parent=1 // pred_check
      _
    $region87: #{vae_forward.1} parent=1 // pred_check_branch
      %192 = sbr.rel (0) target = $region89
    $region88: #{vae_forward.1} parent=1 // pred_region
      _
    $region89: #{vae_forward.1} parent=1 // pred_fallthru
      _
    // Predicated region
    $region90: #{vae_forward.1} parent=1 // pred_check
      _
    $region91: #{vae_forward.1} parent=1 // pred_check_branch
      %194 = sbr.rel (0) target = $region93
    $region92: #{vae_forward.1} parent=1 // pred_region
      %196 = vsyncadd [#allocation15], 0
      %s197 = sshll.u32 %s45, 4
      %s198 = int_to_ptr.hbm [resolvable:$true] %s197
      %s199 = sshll.u32 [#allocation14], 4
      %s200 = int_to_ptr.vmem [resolvable:$true] %s199
      %205 = dma.hbm_to_vmem [thread:$0]  %s198, 2048, %s200, [#allocation15], 128, 128, 8
    $region93: #{vae_forward.1} parent=1 // pred_fallthru
      _
    // Predicated region
    $region94: #{vae_forward.1} parent=1 // pred_check
      _
    $region95: #{vae_forward.1} parent=1 // pred_check_branch
      %207 = sbr.rel (0) target = $region97
    $region96: #{vae_forward.1} parent=1 // pred_region
      _
    $region97: #{vae_forward.1} parent=1 // pred_fallthru
      _
    // Predicated region
    $region98: #{vae_forward.1} parent=1 // pred_check
      _
    $region99: #{vae_forward.1} parent=1 // pred_check_branch
      %209 = sbr.rel (0) target = $region101
    $region100: #{vae_forward.1} parent=1 // pred_region
      %211 = vsyncadd [#allocation15], 0
      %s212 = sshll.u32 %s49, 4
      %s213 = int_to_ptr.hbm [resolvable:$true] %s212
      %s214 = sshll.u32 [#allocation16], 4
      %s215 = int_to_ptr.vmem [resolvable:$true] %s214
      %220 = dma.hbm_to_vmem [thread:$0]  %s213, 1024, %s215, [#allocation15], 128, 128, 8
    $region101: #{vae_forward.1} parent=1 // pred_fallthru
      _
    // Predicated region
    $region102: #{vae_forward.1} parent=1 // pred_check
      _
    $region103: #{vae_forward.1} parent=1 // pred_check_branch
      %222 = sbr.rel (0) target = $region105
    $region104: #{vae_forward.1} parent=1 // pred_region
      _
    $region105: #{vae_forward.1} parent=1 // pred_fallthru
      _
    // Predicated region
    $region106: #{vae_forward.1} parent=1 // pred_check
      _
    $region107: #{vae_forward.1} parent=1 // pred_check_branch
      %224 = sbr.rel (0) target = $region109
    $region108: #{vae_forward.1} parent=1 // pred_region
      _
    $region109: #{vae_forward.1} parent=1 // pred_fallthru
      _
    // Predicated region
    $region110: #{vae_forward.1} parent=1 // pred_check
      _
    $region111: #{vae_forward.1} parent=1 // pred_check_branch
      %226 = sbr.rel (0) target = $region113
    $region112: #{vae_forward.1} parent=1 // pred_region
      %228 = dma.done [#allocation3], 1024
    $region113: #{vae_forward.1} parent=1 // pred_fallthru
      _
    // Predicated region
    $region114: #{vae_forward.1} parent=1 // pred_check
      _
    $region115: #{vae_forward.1} parent=1 // pred_check_branch
      %230 = sbr.rel (0) target = $region117
    $region116: #{vae_forward.1} parent=1 // pred_region
      %232 = dma.done [#allocation6], 2048
    $region117: #{vae_forward.1} parent=1 // pred_fallthru
      _
    // Predicated region
    $region118: #{vae_forward.1} parent=1 // pred_check
      _
    $region119: #{vae_forward.1} parent=1 // pred_check_branch
      %234 = sbr.rel (0) target = $region121
    $region120: #{vae_forward.1} parent=1 // pred_region
      %236 = dma.done [#allocation6], 2048
    $region121: #{vae_forward.1} parent=1 // pred_fallthru
      _
    // Predicated region
    $region122: #{vae_forward.1} parent=1 // pred_check
      _
    $region123: #{vae_forward.1} parent=1 // pred_check_branch
      %238 = sbr.rel (0) target = $region125
    $region124: #{vae_forward.1} parent=1 // pred_region
      %240 = dma.done [#allocation9], 2048
    $region125: #{vae_forward.1} parent=1 // pred_fallthru
      _
    // Predicated region
    $region126: #{vae_forward.1} parent=1 // pred_check
      _
    $region127: #{vae_forward.1} parent=1 // pred_check_branch
      %242 = sbr.rel (0) target = $region129
    $region128: #{vae_forward.1} parent=1 // pred_region
      %244 = dma.done [#allocation9], 2048
    $region129: #{vae_forward.1} parent=1 // pred_fallthru
      _
    // Predicated region
    $region130: #{vae_forward.1} parent=1 // pred_check
      _
    $region131: #{vae_forward.1} parent=1 // pred_check_branch
      %246 = sbr.rel (0) target = $region133
    $region132: #{vae_forward.1} parent=1 // pred_region
      %248 = dma.done [#allocation12], 2048
    $region133: #{vae_forward.1} parent=1 // pred_fallthru
      _
    // Predicated region
    $region134: #{vae_forward.1} parent=1 // pred_check
      _
    $region135: #{vae_forward.1} parent=1 // pred_check_branch
      %250 = sbr.rel (0) target = $region137
    $region136: #{vae_forward.1} parent=1 // pred_region
      %252 = dma.done [#allocation12], 2048
    $region137: #{vae_forward.1} parent=1 // pred_fallthru
      _
    // Predicated region
    $region138: #{vae_forward.1} parent=1 // pred_check
      _
    $region139: #{vae_forward.1} parent=1 // pred_check_branch
      %254 = sbr.rel (0) target = $region141
    $region140: #{vae_forward.1} parent=1 // pred_region
      %256 = dma.done [#allocation15], 2048
    $region141: #{vae_forward.1} parent=1 // pred_fallthru
      _
    // Predicated region
    $region142: #{vae_forward.1} parent=1 // pred_check
      _
    $region143: #{vae_forward.1} parent=1 // pred_check_branch
      %258 = sbr.rel (0) target = $region145
    $region144: #{vae_forward.1} parent=1 // pred_region
      %260 = dma.done [#allocation15], 1024
    $region145: #{vae_forward.1} parent=1 // pred_fallthru
      _
    %v261 = vld [vmem:[%s1] sm:$0x3]
    %v262 = vld [vmem:[#allocation2] sm:$0xff]
    %v263 = vld [vmem:[#allocation2 + $0x8] sm:$0xff]
    %v264 = vld [vmem:[#allocation2 + $0x10] sm:$0xff]
    %v265 = vld [vmem:[#allocation2 + $0x18] sm:$0xff]
    %v266 = vld [vmem:[#allocation2 + $0x20] sm:$0xff]
    %v267 = vld [vmem:[#allocation2 + $0x28] sm:$0xff]
    %v268 = vld [vmem:[#allocation2 + $0x30] sm:$0xff]
    %v269 = vld [vmem:[#allocation2 + $0x38] sm:$0xff]
    %v270 = vld [vmem:[%s7] sm:$0x1]
    %v272 = vperm.slane %v270, 0
    %vm274 = vcmask 523264
    %v276 = vsel %vm274, %v261, 0
    %278 = vmatpush.msra.mxu0 0.0
    %279 = vmatpush.msra.mxu0 0.0
    %280 = vmatpush.msra.mxu0 0.0
    %281 = vmatpush.msra.mxu0 0.0
    %282 = vmatpush.msra.mxu0 0.0
    %283 = vmatpush.msra.mxu0 0.0
    %284 = vmatpush.msra.mxu0 0.0
    %285 = vmatpush.msra.mxu0 0.0
    %286 = vmatpush.msra.mxu0 %v269
    %287 = vmatpush.msra.mxu0 %v268
    %288 = vmatpush.msra.mxu0 %v267
    %289 = vmatpush.msra.mxu0 %v266
    %290 = vmatpush.msra.mxu0 %v265
    %291 = vmatpush.msra.mxu0 %v264
    %292 = vmatpush.msra.mxu0 %v263
    %293 = vmatpush.msra.mxu0 %v262
    %294 = vmatmul.f32.gmra.mxu0 %v276
    %v295 = vpop.f32.mrf.mxu0
    %v296 = vadd.f32 %v272, %v295
    %297 = vdwg.mxu0
    %v298 = vld [vmem:[#allocation5] sm:$0xff]
    %v299 = vld [vmem:[#allocation5 + $0x8] sm:$0xff]
    %v300 = vld [vmem:[#allocation5 + $0x10] sm:$0xff]
    %v301 = vld [vmem:[#allocation5 + $0x18] sm:$0xff]
    %v302 = vld [vmem:[#allocation5 + $0x20] sm:$0xff]
    %v303 = vld [vmem:[#allocation5 + $0x28] sm:$0xff]
    %v304 = vld [vmem:[#allocation5 + $0x30] sm:$0xff]
    %v305 = vld [vmem:[#allocation5 + $0x38] sm:$0xff]
    %v306 = vld [vmem:[#allocation5 + $0x40] sm:$0xff]
    %v307 = vld [vmem:[#allocation5 + $0x48] sm:$0xff]
    %v308 = vld [vmem:[#allocation5 + $0x50] sm:$0xff]
    %v309 = vld [vmem:[#allocation5 + $0x58] sm:$0xff]
    %v310 = vld [vmem:[#allocation5 + $0x60] sm:$0xff]
    %v311 = vld [vmem:[#allocation5 + $0x68] sm:$0xff]
    %v312 = vld [vmem:[#allocation5 + $0x70] sm:$0xff]
    %v313 = vld [vmem:[#allocation5 + $0x78] sm:$0xff]
    %314 = vmatpush.msra.mxu0 %v313
    %315 = vmatpush.msra.mxu0 %v312
    %316 = vmatpush.msra.mxu0 %v311
    %317 = vmatpush.msra.mxu0 %v310
    %318 = vmatpush.msra.mxu0 %v309
    %319 = vmatpush.msra.mxu0 %v308
    %320 = vmatpush.msra.mxu0 %v307
    %321 = vmatpush.msra.mxu0 %v306
    %322 = vmatpush.msra.mxu0 %v305
    %323 = vmatpush.msra.mxu0 %v304
    %324 = vmatpush.msra.mxu0 %v303
    %325 = vmatpush.msra.mxu0 %v302
    %326 = vmatpush.msra.mxu0 %v301
    %327 = vmatpush.msra.mxu0 %v300
    %328 = vmatpush.msra.mxu0 %v299
    %329 = vmatpush.msra.mxu0 %v298
    %330 = vmatmul.f32.gmra.mxu0 %v296
    %v331 = vpop.f32.mrf.mxu0
    %v332 = vadd.f32 0.0, %v331
    %333 = vdwg.mxu0
    %v334 = vmul.f32 %v296, %v296
    %335 = vmatpush.msra.mxu0 %v313
    %336 = vmatpush.msra.mxu0 %v312
    %337 = vmatpush.msra.mxu0 %v311
    %338 = vmatpush.msra.mxu0 %v310
    %339 = vmatpush.msra.mxu0 %v309
    %340 = vmatpush.msra.mxu0 %v308
    %341 = vmatpush.msra.mxu0 %v307
    %342 = vmatpush.msra.mxu0 %v306
    %343 = vmatpush.msra.mxu0 %v305
    %344 = vmatpush.msra.mxu0 %v304
    %345 = vmatpush.msra.mxu0 %v303
    %346 = vmatpush.msra.mxu0 %v302
    %347 = vmatpush.msra.mxu0 %v301
    %348 = vmatpush.msra.mxu0 %v300
    %349 = vmatpush.msra.mxu0 %v299
    %350 = vmatpush.msra.mxu0 %v298
    %351 = vmatmul.f32.gmra.mxu0 %v334
    %v352 = vpop.f32.mrf.mxu0
    %v353 = vadd.f32 0.0, %v352
    %354 = vdwg.mxu0
    %v355 = vmul.f32 %v332, %v332
    %v356 = vsub.f32 %v353, %v355
    %v357 = vsub.f32 %v296, %v332
    %v358 = vadd.f32 %v356, 1e-05
    %v359 = vrsqrt.pop %v358
    %v360 = vmul.f32 %v359, %v358
    %v361 = vmul.f32 %v360, %v359
    %v362 = vmul.f32 0.5, %v361
    %v363 = vsub.f32 1.5, %v362
    %v364 = vmul.f32 %v359, %v363
    %vm365 = vweird.f32 %v358
    %vm366 = vweird.f32 %v359
    %vm367 = vmor %vm365, %vm366
    %v368 = vsel %vm367, %v359, %v364
    %v369 = vmul.f32 %v357, %v368
    %v370 = vld [vmem:[%s11] sm:$0x1]
    %v372 = vperm.slane %v370, 0
    %v374 = vmul.f32 %v369, %v372
    %v375 = vld [vmem:[%s13] sm:$0x1]
    %v377 = vperm.slane %v375, 0
    %v379 = vadd.f32 %v374, %v377
    %vm380 = vcmp.ge.f32.partialorder %v379, 0.0
    %v381 = vmul.f32 %v379, 0.01
    %v382 = vsel %vm380, %v379, %v381
    %v383 = vld [vmem:[#allocation7] sm:$0xff]
    %v384 = vld [vmem:[#allocation7 + $0x8] sm:$0xff]
    %v385 = vld [vmem:[#allocation7 + $0x10] sm:$0xff]
    %v386 = vld [vmem:[#allocation7 + $0x18] sm:$0xff]
    %v387 = vld [vmem:[#allocation7 + $0x20] sm:$0xff]
    %v388 = vld [vmem:[#allocation7 + $0x28] sm:$0xff]
    %v389 = vld [vmem:[#allocation7 + $0x30] sm:$0xff]
    %v390 = vld [vmem:[#allocation7 + $0x38] sm:$0xff]
    %v391 = vld [vmem:[#allocation7 + $0x40] sm:$0xff]
    %v392 = vld [vmem:[#allocation7 + $0x48] sm:$0xff]
    %v393 = vld [vmem:[#allocation7 + $0x50] sm:$0xff]
    %v394 = vld [vmem:[#allocation7 + $0x58] sm:$0xff]
    %v395 = vld [vmem:[#allocation7 + $0x60] sm:$0xff]
    %v396 = vld [vmem:[#allocation7 + $0x68] sm:$0xff]
    %v397 = vld [vmem:[#allocation7 + $0x70] sm:$0xff]
    %v398 = vld [vmem:[#allocation7 + $0x78] sm:$0xff]
    %v399 = vld [vmem:[%s17] sm:$0x1]
    %v401 = vperm.slane %v399, 0
    %403 = vmatpush.msra.mxu0 %v398
    %404 = vmatpush.msra.mxu0 %v397
    %405 = vmatpush.msra.mxu0 %v396
    %406 = vmatpush.msra.mxu0 %v395
    %407 = vmatpush.msra.mxu0 %v394
    %408 = vmatpush.msra.mxu0 %v393
    %409 = vmatpush.msra.mxu0 %v392
    %410 = vmatpush.msra.mxu0 %v391
    %411 = vmatpush.msra.mxu0 %v390
    %412 = vmatpush.msra.mxu0 %v389
    %413 = vmatpush.msra.mxu0 %v388
    %414 = vmatpush.msra.mxu0 %v387
    %415 = vmatpush.msra.mxu0 %v386
    %416 = vmatpush.msra.mxu0 %v385
    %417 = vmatpush.msra.mxu0 %v384
    %418 = vmatpush.msra.mxu0 %v383
    %419 = vmatmul.f32.gmra.mxu0 %v382
    %v420 = vpop.f32.mrf.mxu0
    %v421 = vadd.f32 %v401, %v420
    %422 = vdwg.mxu0
    %v423 = vld [vmem:[#allocation8] sm:$0xff]
    %v424 = vld [vmem:[#allocation8 + $0x8] sm:$0xff]
    %v425 = vld [vmem:[#allocation8 + $0x10] sm:$0xff]
    %v426 = vld [vmem:[#allocation8 + $0x18] sm:$0xff]
    %v427 = vld [vmem:[#allocation8 + $0x20] sm:$0xff]
    %v428 = vld [vmem:[#allocation8 + $0x28] sm:$0xff]
    %v429 = vld [vmem:[#allocation8 + $0x30] sm:$0xff]
    %v430 = vld [vmem:[#allocation8 + $0x38] sm:$0xff]
    %v431 = vld [vmem:[#allocation8 + $0x40] sm:$0xff]
    %v432 = vld [vmem:[#allocation8 + $0x48] sm:$0xff]
    %v433 = vld [vmem:[#allocation8 + $0x50] sm:$0xff]
    %v434 = vld [vmem:[#allocation8 + $0x58] sm:$0xff]
    %v435 = vld [vmem:[#allocation8 + $0x60] sm:$0xff]
    %v436 = vld [vmem:[#allocation8 + $0x68] sm:$0xff]
    %v437 = vld [vmem:[#allocation8 + $0x70] sm:$0xff]
    %v438 = vld [vmem:[#allocation8 + $0x78] sm:$0xff]
    %439 = vmatpush.msra.mxu0 %v438
    %440 = vmatpush.msra.mxu0 %v437
    %441 = vmatpush.msra.mxu0 %v436
    %442 = vmatpush.msra.mxu0 %v435
    %443 = vmatpush.msra.mxu0 %v434
    %444 = vmatpush.msra.mxu0 %v433
    %445 = vmatpush.msra.mxu0 %v432
    %446 = vmatpush.msra.mxu0 %v431
    %447 = vmatpush.msra.mxu0 %v430
    %448 = vmatpush.msra.mxu0 %v429
    %449 = vmatpush.msra.mxu0 %v428
    %450 = vmatpush.msra.mxu0 %v427
    %451 = vmatpush.msra.mxu0 %v426
    %452 = vmatpush.msra.mxu0 %v425
    %453 = vmatpush.msra.mxu0 %v424
    %454 = vmatpush.msra.mxu0 %v423
    %455 = vmatmul.f32.gmra.mxu0 %v421
    %v456 = vpop.f32.mrf.mxu0
    %v457 = vadd.f32 0.0, %v456
    %458 = vdwg.mxu0
    %v459 = vmul.f32 %v421, %v421
    %460 = vmatpush.msra.mxu0 %v438
    %461 = vmatpush.msra.mxu0 %v437
    %462 = vmatpush.msra.mxu0 %v436
    %463 = vmatpush.msra.mxu0 %v435
    %464 = vmatpush.msra.mxu0 %v434
    %465 = vmatpush.msra.mxu0 %v433
    %466 = vmatpush.msra.mxu0 %v432
    %467 = vmatpush.msra.mxu0 %v431
    %468 = vmatpush.msra.mxu0 %v430
    %469 = vmatpush.msra.mxu0 %v429
    %470 = vmatpush.msra.mxu0 %v428
    %471 = vmatpush.msra.mxu0 %v427
    %472 = vmatpush.msra.mxu0 %v426
    %473 = vmatpush.msra.mxu0 %v425
    %474 = vmatpush.msra.mxu0 %v424
    %475 = vmatpush.msra.mxu0 %v423
    %476 = vmatmul.f32.gmra.mxu0 %v459
    %v477 = vpop.f32.mrf.mxu0
    %v478 = vadd.f32 0.0, %v477
    %479 = vdwg.mxu0
    %v480 = vmul.f32 %v457, %v457
    %v481 = vsub.f32 %v478, %v480
    %v482 = vsub.f32 %v421, %v457
    %v483 = vadd.f32 %v481, 1e-05
    %v484 = vrsqrt.pop %v483
    %v485 = vmul.f32 %v484, %v483
    %v486 = vmul.f32 %v485, %v484
    %v487 = vmul.f32 0.5, %v486
    %v488 = vsub.f32 1.5, %v487
    %v489 = vmul.f32 %v484, %v488
    %vm490 = vweird.f32 %v483
    %vm491 = vweird.f32 %v484
    %vm492 = vmor %vm490, %vm491
    %v493 = vsel %vm492, %v484, %v489
    %v494 = vmul.f32 %v482, %v493
    %v495 = vld [vmem:[%s21] sm:$0x1]
    %v497 = vperm.slane %v495, 0
    %v499 = vmul.f32 %v494, %v497
    %v500 = vld [vmem:[%s23] sm:$0x1]
    %v502 = vperm.slane %v500, 0
    %v504 = vadd.f32 %v499, %v502
    %vm505 = vcmp.ge.f32.partialorder %v504, 0.0
    %v506 = vmul.f32 %v504, 0.01
    %v507 = vsel %vm505, %v504, %v506
    %v508 = vld [vmem:[#allocation10] sm:$0xff]
    %v509 = vld [vmem:[#allocation10 + $0x8] sm:$0xff]
    %v510 = vld [vmem:[#allocation10 + $0x10] sm:$0xff]
    %v511 = vld [vmem:[#allocation10 + $0x18] sm:$0xff]
    %v512 = vld [vmem:[#allocation10 + $0x20] sm:$0xff]
    %v513 = vld [vmem:[#allocation10 + $0x28] sm:$0xff]
    %v514 = vld [vmem:[#allocation10 + $0x30] sm:$0xff]
    %v515 = vld [vmem:[#allocation10 + $0x38] sm:$0xff]
    %v516 = vld [vmem:[#allocation10 + $0x40] sm:$0xff]
    %v517 = vld [vmem:[#allocation10 + $0x48] sm:$0xff]
    %v518 = vld [vmem:[#allocation10 + $0x50] sm:$0xff]
    %v519 = vld [vmem:[#allocation10 + $0x58] sm:$0xff]
    %v520 = vld [vmem:[#allocation10 + $0x60] sm:$0xff]
    %v521 = vld [vmem:[#allocation10 + $0x68] sm:$0xff]
    %v522 = vld [vmem:[#allocation10 + $0x70] sm:$0xff]
    %v523 = vld [vmem:[#allocation10 + $0x78] sm:$0xff]
    %v524 = vld [vmem:[%s27] sm:$0x1]
    %v526 = vperm.slane %v524, 0
    %528 = vmatpush.msra.mxu0 %v523
    %529 = vmatpush.msra.mxu0 %v522
    %530 = vmatpush.msra.mxu0 %v521
    %531 = vmatpush.msra.mxu0 %v520
    %532 = vmatpush.msra.mxu0 %v519
    %533 = vmatpush.msra.mxu0 %v518
    %534 = vmatpush.msra.mxu0 %v517
    %535 = vmatpush.msra.mxu0 %v516
    %536 = vmatpush.msra.mxu0 %v515
    %537 = vmatpush.msra.mxu0 %v514
    %538 = vmatpush.msra.mxu0 %v513
    %539 = vmatpush.msra.mxu0 %v512
    %540 = vmatpush.msra.mxu0 %v511
    %541 = vmatpush.msra.mxu0 %v510
    %542 = vmatpush.msra.mxu0 %v509
    %543 = vmatpush.msra.mxu0 %v508
    %544 = vmatmul.f32.gmra.mxu0 %v507
    %v545 = vpop.f32.mrf.mxu0
    %v546 = vadd.f32 %v526, %v545
    %547 = vdwg.mxu0
    %vm548 = vcmask 58368
    %549 = vst.msk [vmem:[#allocation17] sm:$0x3] %vm548, %v546
    %551 = vrot.lane.b32.xlu0 %v546, 120
    %v552 = vpop.permute.xlu0 %551
    %554 = vst.msk [vmem:[#allocation18] sm:$0x3] %vm548, %v552
    %v555 = vld [vmem:[%s29] sm:$0xff]
    %v556 = vld [vmem:[%s31] sm:$0x1]
    %v558 = vperm.slane %v556, 0
    %vm560 = vcmask 64512
    %v561 = vsel %vm560, %v546, 0
    %563 = vmatpush.msra.mxu0 0.0
    %564 = vmatpush.msra.mxu0 0.0
    %565 = vmatpush.msra.mxu0 0.0
    %566 = vmatpush.msra.mxu0 0.0
    %567 = vmatpush.msra.mxu0 0.0
    %568 = vmatpush.msra.mxu0 0.0
    %569 = vmatpush.msra.mxu0 0.0
    %570 = vmatpush.msra.mxu0 0.0
    %571 = vmatpush.msra.mxu0 0.0
    %572 = vmatpush.msra.mxu0 0.0
    %573 = vmatpush.msra.mxu0 0.0
    %574 = vmatpush.msra.mxu0 0.0
    %575 = vmatpush.msra.mxu0 0.0
    %576 = vmatpush.msra.mxu0 0.0
    %577 = vmatpush.msra.mxu0 0.0
    %578 = vmatpush.msra.mxu0 %v555
    %579 = vmatmul.f32.gmra.mxu0 %v561
    %v580 = vpop.f32.mrf.mxu0
    %v581 = vadd.f32 %v558, %v580
    %582 = vdwg.mxu0
    %v583 = vlaneseq
    %v584 = vand.u32 %v583, 127
    %v585 = vld [vmem:[%s3] sm:$0x3]
    %586 = vset.pattern.permute.xlu0 0
    %587 = vperm.xlu0 %586, %v585
    %v588 = vpop.permute.xlu0 %587
    %vm589 = vcmp.eq.s32.totalorder %v588, %v584
    %v590 = vsel %vm589, 1, 0
    %v591 = vcvt.s32.f32 %v590
    %v592 = vld [vmem:[%s33] sm:$0xf]
    %vm593 = vcmask 31744
    %v595 = vsel %vm593, %v591, 0
    %vm597 = vcmask 1043456
    %v599 = vsel %vm597, %v592, 0
    %601 = vmatpush.msra.mxu0 0.0
    %602 = vmatpush.msra.mxu0 0.0
    %603 = vmatpush.msra.mxu0 0.0
    %604 = vmatpush.msra.mxu0 0.0
    %605 = vmatpush.msra.mxu0 0.0
    %606 = vmatpush.msra.mxu0 0.0
    %607 = vmatpush.msra.mxu0 0.0
    %608 = vmatpush.msra.mxu0 0.0
    %609 = vmatpush.msra.mxu0 0.0
    %610 = vmatpush.msra.mxu0 0.0
    %611 = vmatpush.msra.mxu0 0.0
    %612 = vmatpush.msra.mxu0 0.0
    %613 = vmatpush.msra.mxu0 0.0
    %614 = vmatpush.msra.mxu0 0.0
    %615 = vmatpush.msra.mxu0 0.0
    %616 = vmatpush.msra.mxu0 %v599
    %617 = vmatmul.f32.gmra.mxu0 %v595
    %v618 = vpop.f32.mrf.mxu0
    %v619 = vadd.f32 0.0, %v618
    %620 = vdwg.mxu0
    %v621 = vadd.f32 %v581, %v619
    %v622 = vld [vmem:[#allocation11] sm:$0xff]
    %v623 = vld [vmem:[#allocation11 + $0x8] sm:$0xff]
    %v624 = vld [vmem:[#allocation11 + $0x10] sm:$0xff]
    %v625 = vld [vmem:[#allocation11 + $0x18] sm:$0xff]
    %v626 = vld [vmem:[#allocation11 + $0x20] sm:$0xff]
    %v627 = vld [vmem:[#allocation11 + $0x28] sm:$0xff]
    %v628 = vld [vmem:[#allocation11 + $0x30] sm:$0xff]
    %v629 = vld [vmem:[#allocation11 + $0x38] sm:$0xff]
    %v630 = vld [vmem:[#allocation11 + $0x40] sm:$0xff]
    %v631 = vld [vmem:[#allocation11 + $0x48] sm:$0xff]
    %v632 = vld [vmem:[#allocation11 + $0x50] sm:$0xff]
    %v633 = vld [vmem:[#allocation11 + $0x58] sm:$0xff]
    %v634 = vld [vmem:[#allocation11 + $0x60] sm:$0xff]
    %v635 = vld [vmem:[#allocation11 + $0x68] sm:$0xff]
    %v636 = vld [vmem:[#allocation11 + $0x70] sm:$0xff]
    %v637 = vld [vmem:[#allocation11 + $0x78] sm:$0xff]
    %v638 = vld [vmem:[%s37] sm:$0x1]
    %v640 = vperm.slane %v638, 0
    %642 = vmatpush.msra.mxu0 %v637
    %643 = vmatpush.msra.mxu0 %v636
    %644 = vmatpush.msra.mxu0 %v635
    %645 = vmatpush.msra.mxu0 %v634
    %646 = vmatpush.msra.mxu0 %v633
    %647 = vmatpush.msra.mxu0 %v632
    %648 = vmatpush.msra.mxu0 %v631
    %649 = vmatpush.msra.mxu0 %v630
    %650 = vmatpush.msra.mxu0 %v629
    %651 = vmatpush.msra.mxu0 %v628
    %652 = vmatpush.msra.mxu0 %v627
    %653 = vmatpush.msra.mxu0 %v626
    %654 = vmatpush.msra.mxu0 %v625
    %655 = vmatpush.msra.mxu0 %v624
    %656 = vmatpush.msra.mxu0 %v623
    %657 = vmatpush.msra.mxu0 %v622
    %658 = vmatmul.f32.gmra.mxu0 %v621
    %v659 = vpop.f32.mrf.mxu0
    %v660 = vadd.f32 %v640, %v659
    %661 = vdwg.mxu0
    %v662 = vld [vmem:[#allocation13] sm:$0xff]
    %v663 = vld [vmem:[#allocation13 + $0x8] sm:$0xff]
    %v664 = vld [vmem:[#allocation13 + $0x10] sm:$0xff]
    %v665 = vld [vmem:[#allocation13 + $0x18] sm:$0xff]
    %v666 = vld [vmem:[#allocation13 + $0x20] sm:$0xff]
    %v667 = vld [vmem:[#allocation13 + $0x28] sm:$0xff]
    %v668 = vld [vmem:[#allocation13 + $0x30] sm:$0xff]
    %v669 = vld [vmem:[#allocation13 + $0x38] sm:$0xff]
    %v670 = vld [vmem:[#allocation13 + $0x40] sm:$0xff]
    %v671 = vld [vmem:[#allocation13 + $0x48] sm:$0xff]
    %v672 = vld [vmem:[#allocation13 + $0x50] sm:$0xff]
    %v673 = vld [vmem:[#allocation13 + $0x58] sm:$0xff]
    %v674 = vld [vmem:[#allocation13 + $0x60] sm:$0xff]
    %v675 = vld [vmem:[#allocation13 + $0x68] sm:$0xff]
    %v676 = vld [vmem:[#allocation13 + $0x70] sm:$0xff]
    %v677 = vld [vmem:[#allocation13 + $0x78] sm:$0xff]
    %678 = vmatpush.msra.mxu0 %v677
    %679 = vmatpush.msra.mxu0 %v676
    %680 = vmatpush.msra.mxu0 %v675
    %681 = vmatpush.msra.mxu0 %v674
    %682 = vmatpush.msra.mxu0 %v673
    %683 = vmatpush.msra.mxu0 %v672
    %684 = vmatpush.msra.mxu0 %v671
    %685 = vmatpush.msra.mxu0 %v670
    %686 = vmatpush.msra.mxu0 %v669
    %687 = vmatpush.msra.mxu0 %v668
    %688 = vmatpush.msra.mxu0 %v667
    %689 = vmatpush.msra.mxu0 %v666
    %690 = vmatpush.msra.mxu0 %v665
    %691 = vmatpush.msra.mxu0 %v664
    %692 = vmatpush.msra.mxu0 %v663
    %693 = vmatpush.msra.mxu0 %v662
    %694 = vmatmul.f32.gmra.mxu0 %v660
    %v695 = vpop.f32.mrf.mxu0
    %v696 = vadd.f32 0.0, %v695
    %697 = vdwg.mxu0
    %v698 = vmul.f32 %v660, %v660
    %699 = vmatpush.msra.mxu0 %v677
    %700 = vmatpush.msra.mxu0 %v676
    %701 = vmatpush.msra.mxu0 %v675
    %702 = vmatpush.msra.mxu0 %v674
    %703 = vmatpush.msra.mxu0 %v673
    %704 = vmatpush.msra.mxu0 %v672
    %705 = vmatpush.msra.mxu0 %v671
    %706 = vmatpush.msra.mxu0 %v670
    %707 = vmatpush.msra.mxu0 %v669
    %708 = vmatpush.msra.mxu0 %v668
    %709 = vmatpush.msra.mxu0 %v667
    %710 = vmatpush.msra.mxu0 %v666
    %711 = vmatpush.msra.mxu0 %v665
    %712 = vmatpush.msra.mxu0 %v664
    %713 = vmatpush.msra.mxu0 %v663
    %714 = vmatpush.msra.mxu0 %v662
    %715 = vmatmul.f32.gmra.mxu0 %v698
    %v716 = vpop.f32.mrf.mxu0
    %v717 = vadd.f32 0.0, %v716
    %718 = vdwg.mxu0
    %v719 = vmul.f32 %v696, %v696
    %v720 = vsub.f32 %v717, %v719
    %v721 = vsub.f32 %v660, %v696
    %v722 = vadd.f32 %v720, 1e-05
    %v723 = vrsqrt.pop %v722
    %v724 = vmul.f32 %v723, %v722
    %v725 = vmul.f32 %v724, %v723
    %v726 = vmul.f32 0.5, %v725
    %v727 = vsub.f32 1.5, %v726
    %v728 = vmul.f32 %v723, %v727
    %vm729 = vweird.f32 %v722
    %vm730 = vweird.f32 %v723
    %vm731 = vmor %vm729, %vm730
    %v732 = vsel %vm731, %v723, %v728
    %v733 = vmul.f32 %v721, %v732
    %v734 = vld [vmem:[%s41] sm:$0x1]
    %v736 = vperm.slane %v734, 0
    %v738 = vmul.f32 %v733, %v736
    %v739 = vld [vmem:[%s43] sm:$0x1]
    %v741 = vperm.slane %v739, 0
    %v743 = vadd.f32 %v738, %v741
    %vm744 = vcmp.ge.f32.partialorder %v743, 0.0
    %v745 = vmul.f32 %v743, 0.01
    %v746 = vsel %vm744, %v743, %v745
    %v747 = vld [vmem:[#allocation14] sm:$0xff]
    %v748 = vld [vmem:[#allocation14 + $0x8] sm:$0xff]
    %v749 = vld [vmem:[#allocation14 + $0x10] sm:$0xff]
    %v750 = vld [vmem:[#allocation14 + $0x18] sm:$0xff]
    %v751 = vld [vmem:[#allocation14 + $0x20] sm:$0xff]
    %v752 = vld [vmem:[#allocation14 + $0x28] sm:$0xff]
    %v753 = vld [vmem:[#allocation14 + $0x30] sm:$0xff]
    %v754 = vld [vmem:[#allocation14 + $0x38] sm:$0xff]
    %v755 = vld [vmem:[#allocation14 + $0x40] sm:$0xff]
    %v756 = vld [vmem:[#allocation14 + $0x48] sm:$0xff]
    %v757 = vld [vmem:[#allocation14 + $0x50] sm:$0xff]
    %v758 = vld [vmem:[#allocation14 + $0x58] sm:$0xff]
    %v759 = vld [vmem:[#allocation14 + $0x60] sm:$0xff]
    %v760 = vld [vmem:[#allocation14 + $0x68] sm:$0xff]
    %v761 = vld [vmem:[#allocation14 + $0x70] sm:$0xff]
    %v762 = vld [vmem:[#allocation14 + $0x78] sm:$0xff]
    %v763 = vld [vmem:[%s47] sm:$0x1]
    %v765 = vperm.slane %v763, 0
    %767 = vmatpush.msra.mxu0 %v762
    %768 = vmatpush.msra.mxu0 %v761
    %769 = vmatpush.msra.mxu0 %v760
    %770 = vmatpush.msra.mxu0 %v759
    %771 = vmatpush.msra.mxu0 %v758
    %772 = vmatpush.msra.mxu0 %v757
    %773 = vmatpush.msra.mxu0 %v756
    %774 = vmatpush.msra.mxu0 %v755
    %775 = vmatpush.msra.mxu0 %v754
    %776 = vmatpush.msra.mxu0 %v753
    %777 = vmatpush.msra.mxu0 %v752
    %778 = vmatpush.msra.mxu0 %v751
    %779 = vmatpush.msra.mxu0 %v750
    %780 = vmatpush.msra.mxu0 %v749
    %781 = vmatpush.msra.mxu0 %v748
    %782 = vmatpush.msra.mxu0 %v747
    %783 = vmatmul.f32.gmra.mxu0 %v746
    %v784 = vpop.f32.mrf.mxu0
    %v785 = vadd.f32 %v765, %v784
    %786 = vdwg.mxu0
    %v787 = vld [vmem:[#allocation16] sm:$0xff]
    %v788 = vld [vmem:[#allocation16 + $0x8] sm:$0xff]
    %v789 = vld [vmem:[#allocation16 + $0x10] sm:$0xff]
    %v790 = vld [vmem:[#allocation16 + $0x18] sm:$0xff]
    %v791 = vld [vmem:[#allocation16 + $0x20] sm:$0xff]
    %v792 = vld [vmem:[#allocation16 + $0x28] sm:$0xff]
    %v793 = vld [vmem:[#allocation16 + $0x30] sm:$0xff]
    %v794 = vld [vmem:[#allocation16 + $0x38] sm:$0xff]
    %v796 = vsel %vm274, %v785, 0
    %798 = vmatpush.msra.mxu0 0.0
    %799 = vmatpush.msra.mxu0 0.0
    %800 = vmatpush.msra.mxu0 0.0
    %801 = vmatpush.msra.mxu0 0.0
    %802 = vmatpush.msra.mxu0 0.0
    %803 = vmatpush.msra.mxu0 0.0
    %804 = vmatpush.msra.mxu0 0.0
    %805 = vmatpush.msra.mxu0 0.0
    %806 = vmatpush.msra.mxu0 %v794
    %807 = vmatpush.msra.mxu0 %v793
    %808 = vmatpush.msra.mxu0 %v792
    %809 = vmatpush.msra.mxu0 %v791
    %810 = vmatpush.msra.mxu0 %v790
    %811 = vmatpush.msra.mxu0 %v789
    %812 = vmatpush.msra.mxu0 %v788
    %813 = vmatpush.msra.mxu0 %v787
    %814 = vmatmul.f32.gmra.mxu0 %v796
    %v815 = vpop.f32.mrf.mxu0
    %v816 = vadd.f32 0.0, %v815
    %817 = vdwg.mxu0
    %v818 = vmul.f32 %v785, %v785
    %v820 = vsel %vm274, %v818, 0
    %822 = vmatpush.msra.mxu0 0.0
    %823 = vmatpush.msra.mxu0 0.0
    %824 = vmatpush.msra.mxu0 0.0
    %825 = vmatpush.msra.mxu0 0.0
    %826 = vmatpush.msra.mxu0 0.0
    %827 = vmatpush.msra.mxu0 0.0
    %828 = vmatpush.msra.mxu0 0.0
    %829 = vmatpush.msra.mxu0 0.0
    %830 = vmatpush.msra.mxu0 %v794
    %831 = vmatpush.msra.mxu0 %v793
    %832 = vmatpush.msra.mxu0 %v792
    %833 = vmatpush.msra.mxu0 %v791
    %834 = vmatpush.msra.mxu0 %v790
    %835 = vmatpush.msra.mxu0 %v789
    %836 = vmatpush.msra.mxu0 %v788
    %837 = vmatpush.msra.mxu0 %v787
    %838 = vmatmul.f32.gmra.mxu0 %v820
    %v839 = vpop.f32.mrf.mxu0
    %v840 = vadd.f32 0.0, %v839
    %841 = vdwg.mxu0
    %v842 = vmul.f32 %v816, %v816
    %v843 = vsub.f32 %v840, %v842
    %v844 = vsub.f32 %v785, %v816
    %v845 = vadd.f32 %v843, 1e-05
    %v846 = vrsqrt.pop %v845
    %v847 = vmul.f32 %v846, %v845
    %v848 = vmul.f32 %v847, %v846
    %v849 = vmul.f32 0.5, %v848
    %v850 = vsub.f32 1.5, %v849
    %v851 = vmul.f32 %v846, %v850
    %vm852 = vweird.f32 %v845
    %vm853 = vweird.f32 %v846
    %vm854 = vmor %vm852, %vm853
    %v855 = vsel %vm854, %v846, %v851
    %v856 = vmul.f32 %v844, %v855
    %v857 = vld [vmem:[%s51] sm:$0x1]
    %v859 = vperm.slane %v857, 0
    %v861 = vmul.f32 %v856, %v859
    %v862 = vld [vmem:[%s53] sm:$0x1]
    %v864 = vperm.slane %v862, 0
    %v866 = vadd.f32 %v861, %v864
    %vm867 = vcmp.ge.f32.partialorder %v866, 0.0
    %v868 = vmul.f32 %v866, 0.01
    %v869 = vsel %vm867, %v866, %v868
    %vm870 = vcmask 517120
    %871 = vst.msk [vmem:[%s55] sm:$0x3] %vm870, %v869
    // Predicated region
    $region146: #{vae_forward.1} parent=1 // pred_check
      _
    $region147: #{vae_forward.1} parent=1 // pred_check_branch
      %873 = sbr.rel (0) target = $region149
    $region148: #{vae_forward.1} parent=1 // pred_region
      _
    $region149: #{vae_forward.1} parent=1 // pred_fallthru
      _
    // Predicated region
    $region150: #{vae_forward.1} parent=1 // pred_check
      _
    $region151: #{vae_forward.1} parent=1 // pred_check_branch
      %875 = sbr.rel (0) target = $region153
    $region152: #{vae_forward.1} parent=1 // pred_region
      %877 = vsyncadd [#allocation4], 0
      %s879 = sshll.u32 [#allocation17], 4
      %s880 = int_to_ptr.vmem [resolvable:$true] %s879
      %s881 = sshll.u32 %s57, 4
      %s882 = int_to_ptr.hbm [resolvable:$true] %s881
      %884 = dma.vmem_to_hbm [thread:$0]  %s880, 32, %s882, [#allocation4]
    $region153: #{vae_forward.1} parent=1 // pred_fallthru
      _
    // Predicated region
    $region154: #{vae_forward.1} parent=1 // pred_check
      _
    $region155: #{vae_forward.1} parent=1 // pred_check_branch
      %886 = sbr.rel (0) target = $region157
    $region156: #{vae_forward.1} parent=1 // pred_region
      %888 = vsyncadd [#allocation19], 0
      %s890 = sshll.u32 [#allocation18], 4
      %s891 = int_to_ptr.vmem [resolvable:$true] %s890
      %s892 = sshll.u32 %s59, 4
      %s893 = int_to_ptr.hbm [resolvable:$true] %s892
      %895 = dma.vmem_to_hbm [thread:$0]  %s891, 32, %s893, [#allocation19]
    $region157: #{vae_forward.1} parent=1 // pred_fallthru
      _
    // Predicated region
    $region158: #{vae_forward.1} parent=1 // pred_check
      _
    $region159: #{vae_forward.1} parent=1 // pred_check_branch
      %897 = sbr.rel (0) target = $region161
    $region160: #{vae_forward.1} parent=1 // pred_region
      _
    $region161: #{vae_forward.1} parent=1 // pred_fallthru
      _
    // Predicated region
    $region162: #{vae_forward.1} parent=1 // pred_check
      _
    $region163: #{vae_forward.1} parent=1 // pred_check_branch
      %899 = sbr.rel (0) target = $region165
    $region164: #{vae_forward.1} parent=1 // pred_region
      %901 = dma.done [#allocation4], 32
    $region165: #{vae_forward.1} parent=1 // pred_fallthru
      _
    // Predicated region
    $region166: #{vae_forward.1} parent=1 // pred_check
      _
    $region167: #{vae_forward.1} parent=1 // pred_check_branch
      %903 = sbr.rel (0) target = $region169
    $region168: #{vae_forward.1} parent=1 // pred_region
      %905 = dma.done [#allocation19], 32
    $region169: #{vae_forward.1} parent=1 // pred_fallthru
      _
    %906 = vsyncpa [#allocation3], 1
    %907 = vsyncpa [#allocation6], 1
    %908 = vsyncpa [#allocation9], 1
    %909 = vsyncpa [#allocation12], 1
    %910 = vsyncpa [#allocation15], 1
    %911 = vsyncpa [#allocation4], 1
    %912 = vsyncpa [#allocation19], 1

</llo_original>
